<compile_context>
chip_gen: v5e
topology: v5e:2x2
jax: 0.10.0
libtpu: 0.0.40
codegen_flags: <defaults>
</compile_context>

<pallas_src>
import functools

import jax
import jax.numpy as jnp
from jax.experimental import pallas as pl
from jax.experimental.pallas import tpu as pltpu


def _round_up(n, m):
    return ((n + m - 1) // m) * m


def _apply_act(y, act):
    """Activation in f32 on the VPU/EUP."""
    if act == "relu":
        return jnp.maximum(y, 0.0)
    if act == "sigmoid":
        # exp on the EUP; divide replaced by EUP vrcp (otherwise-idle slot).
        return pl.reciprocal(1.0 + jnp.exp(-y), approx=True)
    if act == "tanh":
        return jnp.tanh(y)
    if act in ("identity", "linear", "none", None):
        return y
    raise ValueError(f"unknown activation {act!r}")


# ----------------------------- fused kernel --------------------------------

def _fused_mlp_kernel(*refs, layer_meta, matmul_dtype):
    """refs = (x_ref, w1, b1, w2, b2, ..., wN, bN, o_ref).

    Computes xN = actN(... act1(x0 @ W1 + b1 [+ x0]) ...) entirely in VMEM.
    All feature dims are zero-padded to 128 lanes; padded weight rows/cols and
    padded bias lanes are zero, so padded lanes never contaminate real lanes.
    """
    x_ref = refs[0]
    o_ref = refs[-1]
    wb = refs[1:-1]

    x = x_ref[...].astype(jnp.float32)
    for i, (residual, act) in enumerate(layer_meta):
        w = wb[2 * i][...]
        b = wb[2 * i + 1][...]
        # MXU matmul (optionally bf16 inputs), f32 accumulate.
        y = jnp.dot(x.astype(matmul_dtype), w.astype(matmul_dtype),
                    preferred_element_type=jnp.float32)
        y = y + b.astype(jnp.float32)      # f32 epilogue (required on v5e)
        if residual:                       # residual BEFORE activation (reference order)
            y = y + x
        x = _apply_act(y, act)
    o_ref[...] = x.astype(o_ref.dtype)


def _fused_mlp_forward(x, weights, biases, *, layer_meta, pad_dims,
                       out_dim_real, view_shape, matmul_dtype):
    """x: (B, input_dim) f32; weights[l]: (pad_in_l, pad_out_l); biases[l]: (1, pad_out_l)."""
    B, in_dim = x.shape
    pad_in0 = pad_dims[0]
    pad_out_last = pad_dims[-1]

    # Batch tiling: multiple of 8 sublanes, up to 256 rows per grid step.
    block_b = min(_round_up(max(B, 1), 8), 256)
    pad_b = _round_up(B, block_b)

    x_p = jnp.pad(x.astype(jnp.float32),
                  ((0, pad_b - B), (0, pad_in0 - in_dim)))

    in_specs = [pl.BlockSpec((block_b, pad_in0), lambda i: (i, 0))]
    flat_params = []
    for l in range(len(layer_meta)):
        # Tiny weights/biases: full blocks, VMEM-resident across grid steps.
        in_specs.append(pl.BlockSpec((pad_dims[l], pad_dims[l + 1]),
                                     lambda i: (0, 0)))
        in_specs.append(pl.BlockSpec((1, pad_dims[l + 1]),
                                     lambda i: (0, 0)))
        flat_params.append(weights[l])
        flat_params.append(biases[l])

    kernel = functools.partial(_fused_mlp_kernel,
                               layer_meta=layer_meta,
                               matmul_dtype=matmul_dtype)

    out_p = pl.pallas_call(
        kernel,
        out_shape=jax.ShapeDtypeStruct((pad_b, pad_out_last), jnp.float32),
        grid_spec=pltpu.PrefetchScalarGridSpec(
            num_scalar_prefetch=0,
            grid=(pad_b // block_b,),
            in_specs=in_specs,
            out_specs=pl.BlockSpec((block_b, pad_out_last), lambda i: (i, 0)),
        ),
        compiler_params=pltpu.CompilerParams(
            dimension_semantics=("parallel",)),
    )(x_p, *flat_params)

    # Slice away the lane/sublane padding once, then MLPReViewModule reshape.
    out = out_p[:B, :out_dim_real]
    return out.reshape((B,) + view_shape)


# ----------------------------- MLPDecoder ----------------------------------

class MLPDecoderPallas:
    def __init__(self, channels, input_dim, Dx, Dy, output_dim,
                 activation, activation_output, layers_size,
                 dropout_keep_prob=1.0, seed=0, matmul_dtype=jnp.float32):
        self.channels = channels
        self.Dx = Dx
        self.Dy = Dy
        self.input_dim = input_dim
        self.output_dim = output_dim
        if channels == 1:
            self.output_dim_expanded = output_dim * Dx
            view_shape = (output_dim, Dx)
        elif channels == 2:
            self.output_dim_expanded = output_dim * Dx * Dy
            view_shape = (output_dim, Dx, Dy)
        else:
            raise ValueError("Not implemented.")
        self.activation = activation
        self.activation_output = activation_output
        self.dropout_keep_prob = dropout_keep_prob
        # TODO(synk): stochastic dropout (keep_prob < 1) not implemented in the
        # fused kernel; with keep_prob = 1.0 (p = 0) it is an exact identity.

        sizes = [self.input_dim] + list(layers_size) + [self.output_dim_expanded]
        self.layers_size = sizes
        pad_dims = tuple(_round_up(s, 128) for s in sizes)

        # Deterministic parameter init (PyTorch nn.Linear-style uniform bounds),
        # pre-transposed to (in, out), zero-padded to lane-dense shapes at init.
        key = jax.random.PRNGKey(seed)
        layer_meta = []
        weights, biases = [], []
        for ln in range(len(sizes) - 1):
            fan_in, fan_out = sizes[ln], sizes[ln + 1]
            key, kw, kb = jax.random.split(key, 3)
            bound = 1.0 / (fan_in ** 0.5)
            w = jax.random.uniform(kw, (fan_out, fan_in), jnp.float32, -bound, bound)
            b = jax.random.uniform(kb, (fan_out,), jnp.float32, -bound, bound)
            w_p = jnp.zeros((pad_dims[ln], pad_dims[ln + 1]), matmul_dtype)
            w_p = w_p.at[:fan_in, :fan_out].set(jnp.transpose(w).astype(matmul_dtype))
            b_p = jnp.zeros((1, pad_dims[ln + 1]), jnp.float32)
            b_p = b_p.at[0, :fan_out].set(b)
            weights.append(w_p)
            biases.append(b_p)
            is_last = (ln == len(sizes) - 2)
            act = self.activation_output if is_last else self.activation
            layer_meta.append((bool(fan_in == fan_out), act))

        self.weights = tuple(weights)
        self.biases = tuple(biases)
        self._forward = jax.jit(functools.partial(
            _fused_mlp_forward,
            layer_meta=tuple(layer_meta),
            pad_dims=pad_dims,
            out_dim_real=self.output_dim_expanded,
            view_shape=view_shape,
            matmul_dtype=matmul_dtype))

    def __call__(self, x):
        return self._forward(x, self.weights, self.biases)


# ------------------------------- main ---------------------------------------

if __name__ == "__main__":
    # Small shapes: latent dim 8 -> hidden [32, 32] -> output_dim=4, Dx=Dy=4.
    B = 2
    decoder = MLPDecoderPallas(
        channels=2, input_dim=8, Dx=4, Dy=4, output_dim=4,
        activation="relu", activation_output="sigmoid",
        layers_size=[32, 32], dropout_keep_prob=1.0, seed=0)

    key = jax.random.PRNGKey(0)
    x = jax.random.normal(key, (B, 8), jnp.float32)

    out = decoder(x)
    out = jax.block_until_ready(out)
    assert out.shape == (B, 4, 4, 4), out.shape
    assert bool(jnp.all(jnp.isfinite(out)))
    # Sigmoid output layer -> values must lie in (0, 1).
    assert bool(jnp.all((out >= 0.0) & (out <= 1.0)))
    print("KERNEL_OK")
</pallas_src>

<mosaic_0001>
module attributes {stable_mosaic.version = 11 : i64} {
  func.func @_fused_mlp_kernel(%arg0: i32, %arg1: memref<8x128xf32, #tpu.memory_space<vmem>>, %arg2: memref<128x128xf32, #tpu.memory_space<vmem>>, %arg3: memref<1x128xf32, #tpu.memory_space<vmem>>, %arg4: memref<128x128xf32, #tpu.memory_space<vmem>>, %arg5: memref<1x128xf32, #tpu.memory_space<vmem>>, %arg6: memref<128x128xf32, #tpu.memory_space<vmem>>, %arg7: memref<1x128xf32, #tpu.memory_space<vmem>>, %arg8: memref<8x128xf32, #tpu.memory_space<vmem>>) attributes {dimension_semantics = [#tpu.dimension_semantics<parallel>], iteration_bounds = array<i64: 1>, scalar_prefetch = 0 : i64, scratch_operands = 0 : i64, tpu.core_type = #tpu.core_type<tc>, window_params = [{transform_indices = @transform_0, window_bounds = array<i64: 8, 128>}, {pipeline_mode = #tpu.pipeline_mode<synchronous>, transform_indices = @transform_1, window_bounds = array<i64: 128, 128>}, {pipeline_mode = #tpu.pipeline_mode<synchronous>, transform_indices = @transform_2, window_bounds = array<i64: 1, 128>}, {pipeline_mode = #tpu.pipeline_mode<synchronous>, transform_indices = @transform_3, window_bounds = array<i64: 128, 128>}, {pipeline_mode = #tpu.pipeline_mode<synchronous>, transform_indices = @transform_4, window_bounds = array<i64: 1, 128>}, {pipeline_mode = #tpu.pipeline_mode<synchronous>, transform_indices = @transform_5, window_bounds = array<i64: 128, 128>}, {pipeline_mode = #tpu.pipeline_mode<synchronous>, transform_indices = @transform_6, window_bounds = array<i64: 1, 128>}, {transform_indices = @transform_7, window_bounds = array<i64: 8, 128>}]} {
    %c0 = arith.constant 0 : index
    %c0_0 = arith.constant 0 : index
    %0 = vector.load %arg1[%c0, %c0_0] : memref<8x128xf32, #tpu.memory_space<vmem>>, vector<8x128xf32>
    %c0_1 = arith.constant 0 : index
    %c0_2 = arith.constant 0 : index
    %1 = vector.load %arg2[%c0_1, %c0_2] : memref<128x128xf32, #tpu.memory_space<vmem>>, vector<128x128xf32>
    %c0_3 = arith.constant 0 : index
    %c0_4 = arith.constant 0 : index
    %2 = vector.load %arg3[%c0_3, %c0_4] : memref<1x128xf32, #tpu.memory_space<vmem>>, vector<1x128xf32>
    %cst = arith.constant dense<0.000000e+00> : vector<8x128xf32>
    %3 = tpu.matmul %0, %1, %cst {dimension_numbers = #tpu.dot_dimension_numbers<[1], [0], [0], [1], [0, 0, 1, 1], [], []>} : vector<8x128xf32>, vector<128x128xf32>, vector<8x128xf32> -> vector<8x128xf32>
    %4 = vector.broadcast %2 : vector<1x128xf32> to vector<8x128xf32>
    %5 = arith.addf %3, %4 : vector<8x128xf32>
    %cst_5 = arith.constant 0.000000e+00 : f32
    %6 = vector.broadcast %cst_5 : f32 to vector<8x128xf32>
    %7 = arith.maximumf %5, %6 : vector<8x128xf32>
    %c0_6 = arith.constant 0 : index
    %c0_7 = arith.constant 0 : index
    %8 = vector.load %arg4[%c0_6, %c0_7] : memref<128x128xf32, #tpu.memory_space<vmem>>, vector<128x128xf32>
    %c0_8 = arith.constant 0 : index
    %c0_9 = arith.constant 0 : index
    %9 = vector.load %arg5[%c0_8, %c0_9] : memref<1x128xf32, #tpu.memory_space<vmem>>, vector<1x128xf32>
    %cst_10 = arith.constant dense<0.000000e+00> : vector<8x128xf32>
    %10 = tpu.matmul %7, %8, %cst_10 {dimension_numbers = #tpu.dot_dimension_numbers<[1], [0], [0], [1], [0, 0, 1, 1], [], []>} : vector<8x128xf32>, vector<128x128xf32>, vector<8x128xf32> -> vector<8x128xf32>
    %11 = vector.broadcast %9 : vector<1x128xf32> to vector<8x128xf32>
    %12 = arith.addf %10, %11 : vector<8x128xf32>
    %13 = arith.addf %12, %7 : vector<8x128xf32>
    %cst_11 = arith.constant 0.000000e+00 : f32
    %14 = vector.broadcast %cst_11 : f32 to vector<8x128xf32>
    %15 = arith.maximumf %13, %14 : vector<8x128xf32>
    %c0_12 = arith.constant 0 : index
    %c0_13 = arith.constant 0 : index
    %16 = vector.load %arg6[%c0_12, %c0_13] : memref<128x128xf32, #tpu.memory_space<vmem>>, vector<128x128xf32>
    %c0_14 = arith.constant 0 : index
    %c0_15 = arith.constant 0 : index
    %17 = vector.load %arg7[%c0_14, %c0_15] : memref<1x128xf32, #tpu.memory_space<vmem>>, vector<1x128xf32>
    %cst_16 = arith.constant dense<0.000000e+00> : vector<8x128xf32>
    %18 = tpu.matmul %15, %16, %cst_16 {dimension_numbers = #tpu.dot_dimension_numbers<[1], [0], [0], [1], [0, 0, 1, 1], [], []>} : vector<8x128xf32>, vector<128x128xf32>, vector<8x128xf32> -> vector<8x128xf32>
    %19 = vector.broadcast %17 : vector<1x128xf32> to vector<8x128xf32>
    %20 = arith.addf %18, %19 : vector<8x128xf32>
    %cst_17 = arith.constant 0.000000e+00 : f32
    %21 = vector.broadcast %cst_17 : f32 to vector<8x128xf32>
    %22 = arith.subf %21, %20 : vector<8x128xf32>
    %23 = math.exp %22 : vector<8x128xf32>
    %cst_18 = arith.constant 1.000000e+00 : f32
    %24 = vector.broadcast %cst_18 : f32 to vector<8x128xf32>
    %25 = arith.addf %24, %23 : vector<8x128xf32>
    %26 = tpu.reciprocal %25 {approx = true} : vector<8x128xf32> -> vector<8x128xf32>
    %c0_19 = arith.constant 0 : index
    %c0_20 = arith.constant 0 : index
    %27 = vector.load %arg8[%c0_19, %c0_20] : memref<8x128xf32, #tpu.memory_space<vmem>>, vector<8x128xf32>
    tpu.vector_store %arg8[%c0_19, %c0_20], %26 {strides = array<i32>} : memref<8x128xf32, #tpu.memory_space<vmem>>, vector<8x128xf32>,
    return
  }
  func.func @transform_0(%arg0: i32) -> (i32, i32) {
    %c0_i32 = arith.constant 0 : i32
    %c0_i32_0 = arith.constant 0 : i32
    return %arg0, %c0_i32 : i32, i32
  }
  func.func @transform_1(%arg0: i32) -> (i32, i32) {
    %c0_i32 = arith.constant 0 : i32
    %c0_i32_0 = arith.constant 0 : i32
    %c0_i32_1 = arith.constant 0 : i32
    return %c0_i32, %c0_i32_0 : i32, i32
  }
  func.func @transform_2(%arg0: i32) -> (i32, i32) {
    %c0_i32 = arith.constant 0 : i32
    %c0_i32_0 = arith.constant 0 : i32
    %c0_i32_1 = arith.constant 0 : i32
    return %c0_i32, %c0_i32_0 : i32, i32
  }
  func.func @transform_3(%arg0: i32) -> (i32, i32) {
    %c0_i32 = arith.constant 0 : i32
    %c0_i32_0 = arith.constant 0 : i32
    %c0_i32_1 = arith.constant 0 : i32
    return %c0_i32, %c0_i32_0 : i32, i32
  }
  func.func @transform_4(%arg0: i32) -> (i32, i32) {
    %c0_i32 = arith.constant 0 : i32
    %c0_i32_0 = arith.constant 0 : i32
    %c0_i32_1 = arith.constant 0 : i32
    return %c0_i32, %c0_i32_0 : i32, i32
  }
  func.func @transform_5(%arg0: i32) -> (i32, i32) {
    %c0_i32 = arith.constant 0 : i32
    %c0_i32_0 = arith.constant 0 : i32
    %c0_i32_1 = arith.constant 0 : i32
    return %c0_i32, %c0_i32_0 : i32, i32
  }
  func.func @transform_6(%arg0: i32) -> (i32, i32) {
    %c0_i32 = arith.constant 0 : i32
    %c0_i32_0 = arith.constant 0 : i32
    %c0_i32_1 = arith.constant 0 : i32
    return %c0_i32, %c0_i32_0 : i32, i32
  }
  func.func @transform_7(%arg0: i32) -> (i32, i32) {
    %c0_i32 = arith.constant 0 : i32
    %c0_i32_0 = arith.constant 0 : i32
    return %arg0, %c0_i32 : i32, i32
  }
}

</mosaic_0001>

<llo_original>
// kernel: _fused_mlp_forward.1
$region0: #{_fused_mlp_forward.1}
  #allocation0 [shape = 'u32[]', space=smem, size = 0x4, offset = 0x4, fixed_abs, tag = 'smem constant byte address 0x4 - core index']
  #allocation1 [shape = 'u32[72,128]{1,0:T(1,128)}', space=vmem, size = 0x9000, scoped, tag = 'internal scratch']
  %s0 = inlined_call_operand.vmem [shape: f32[8,128], index: 0, kind: input, shape index: {}]
  %s1 = inlined_call_operand.hbm [shape: f32[128,128], index: 1, kind: input, shape index: {}]
  %s2 = inlined_call_operand.vmem [shape: f32[1,128], index: 2, kind: input, shape index: {}]
  %s3 = inlined_call_operand.hbm [shape: f32[128,128], index: 3, kind: input, shape index: {}]
  %s4 = inlined_call_operand.vmem [shape: f32[1,128], index: 4, kind: input, shape index: {}]
  %s5 = inlined_call_operand.hbm [shape: f32[128,128], index: 5, kind: input, shape index: {}]
  %s6 = inlined_call_operand.vmem [shape: f32[1,128], index: 6, kind: input, shape index: {}]
  %s7 = inlined_call_operand.vmem [shape: f32[8,128], index: 7, kind: output, shape index: {}]
  %s8 = sld [smem:[#allocation0]]
  $region50: #{_fused_mlp_forward.1} parent=0
    _
  %s10 = ssub.s32 1, %s8
  %s11 = scalar_select 0, %s10, %s8
  $region1: #{_fused_mlp_forward.1} parent=0
    #allocation2 [shape = 'u8[65536]{0}', space=vmem, size = 0x10000, scoped, tag = 'input window, operand 1, single buffered']
    #allocation3 [shape = 's32[1]{0}', space=sflag, size = 0x4, scoped, tag = 'scoped memory for _fused_mlp_forward.1']
    #allocation4 [shape = 'u8[65536]{0}', space=vmem, size = 0x10000, scoped, tag = 'input window, operand 3, single buffered']
    #allocation5 [shape = 's32[1]{0}', space=sflag, size = 0x4, scoped, tag = 'scoped memory for _fused_mlp_forward.1']
    #allocation6 [shape = 'u8[65536]{0}', space=vmem, size = 0x10000, scoped, tag = 'input window, operand 5, single buffered']
    %12 = vsyncpa [#allocation3], 0
    %13 = vsyncpa [#allocation5], 0
    // Predicated region
    $region2: #{_fused_mlp_forward.1} parent=1 // pred_check
      _
    $region3: #{_fused_mlp_forward.1} parent=1 // pred_check_branch
      %15 = sbr.rel (0) target = $region5
    $region4: #{_fused_mlp_forward.1} parent=1 // pred_region
      _
    $region5: #{_fused_mlp_forward.1} parent=1 // pred_fallthru
      _
    // Predicated region
    $region6: #{_fused_mlp_forward.1} parent=1 // pred_check
      _
    $region7: #{_fused_mlp_forward.1} parent=1 // pred_check_branch
      %17 = sbr.rel (0) target = $region9
    $region8: #{_fused_mlp_forward.1} parent=1 // pred_region
      %19 = vsyncadd [#allocation3], 0
      %s20 = sshll.u32 %s1, 4
      %s21 = int_to_ptr.hbm [resolvable:$true] %s20
      %s22 = sshll.u32 [#allocation2], 4
      %s23 = int_to_ptr.vmem [resolvable:$true] %s22
      %28 = dma.hbm_to_vmem [thread:$0]  %s21, 2048, %s23, [#allocation3], 128, 128, 8
    $region9: #{_fused_mlp_forward.1} parent=1 // pred_fallthru
      _
    // Predicated region
    $region10: #{_fused_mlp_forward.1} parent=1 // pred_check
      _
    $region11: #{_fused_mlp_forward.1} parent=1 // pred_check_branch
      %30 = sbr.rel (0) target = $region13
    $region12: #{_fused_mlp_forward.1} parent=1 // pred_region
      _
    $region13: #{_fused_mlp_forward.1} parent=1 // pred_fallthru
      _
    // Predicated region
    $region14: #{_fused_mlp_forward.1} parent=1 // pred_check
      _
    $region15: #{_fused_mlp_forward.1} parent=1 // pred_check_branch
      %32 = sbr.rel (0) target = $region17
    $region16: #{_fused_mlp_forward.1} parent=1 // pred_region
      %34 = vsyncadd [#allocation5], 0
      %s35 = sshll.u32 %s3, 4
      %s36 = int_to_ptr.hbm [resolvable:$true] %s35
      %s37 = sshll.u32 [#allocation4], 4
      %s38 = int_to_ptr.vmem [resolvable:$true] %s37
      %43 = dma.hbm_to_vmem [thread:$0]  %s36, 2048, %s38, [#allocation5], 128, 128, 8
    $region17: #{_fused_mlp_forward.1} parent=1 // pred_fallthru
      _
    // Predicated region
    $region18: #{_fused_mlp_forward.1} parent=1 // pred_check
      _
    $region19: #{_fused_mlp_forward.1} parent=1 // pred_check_branch
      %45 = sbr.rel (0) target = $region21
    $region20: #{_fused_mlp_forward.1} parent=1 // pred_region
      _
    $region21: #{_fused_mlp_forward.1} parent=1 // pred_fallthru
      _
    // Predicated region
    $region22: #{_fused_mlp_forward.1} parent=1 // pred_check
      _
    $region23: #{_fused_mlp_forward.1} parent=1 // pred_check_branch
      %47 = sbr.rel (0) target = $region25
    $region24: #{_fused_mlp_forward.1} parent=1 // pred_region
      %49 = vsyncadd [#allocation5], 0
      %s50 = sshll.u32 %s5, 4
      %s51 = int_to_ptr.hbm [resolvable:$true] %s50
      %s52 = sshll.u32 [#allocation6], 4
      %s53 = int_to_ptr.vmem [resolvable:$true] %s52
      %58 = dma.hbm_to_vmem [thread:$0]  %s51, 2048, %s53, [#allocation5], 128, 128, 8
    $region25: #{_fused_mlp_forward.1} parent=1 // pred_fallthru
      _
    // Predicated region
    $region26: #{_fused_mlp_forward.1} parent=1 // pred_check
      _
    $region27: #{_fused_mlp_forward.1} parent=1 // pred_check_branch
      %60 = sbr.rel (0) target = $region29
    $region28: #{_fused_mlp_forward.1} parent=1 // pred_region
      _
    $region29: #{_fused_mlp_forward.1} parent=1 // pred_fallthru
      _
    // Predicated region
    $region30: #{_fused_mlp_forward.1} parent=1 // pred_check
      _
    $region31: #{_fused_mlp_forward.1} parent=1 // pred_check_branch
      %62 = sbr.rel (0) target = $region33
    $region32: #{_fused_mlp_forward.1} parent=1 // pred_region
      %64 = dma.done [#allocation3], 2048
    $region33: #{_fused_mlp_forward.1} parent=1 // pred_fallthru
      _
    // Predicated region
    $region34: #{_fused_mlp_forward.1} parent=1 // pred_check
      _
    $region35: #{_fused_mlp_forward.1} parent=1 // pred_check_branch
      %66 = sbr.rel (0) target = $region37
    $region36: #{_fused_mlp_forward.1} parent=1 // pred_region
      %68 = dma.done [#allocation5], 2048
    $region37: #{_fused_mlp_forward.1} parent=1 // pred_fallthru
      _
    // Predicated region
    $region38: #{_fused_mlp_forward.1} parent=1 // pred_check
      _
    $region39: #{_fused_mlp_forward.1} parent=1 // pred_check_branch
      %70 = sbr.rel (0) target = $region41
    $region40: #{_fused_mlp_forward.1} parent=1 // pred_region
      %72 = dma.done [#allocation5], 2048
    $region41: #{_fused_mlp_forward.1} parent=1 // pred_fallthru
      _
    %v73 = vld [vmem:[%s0] sm:$0xff]
    %v74 = vld [vmem:[#allocation2] sm:$0xff]
    %v75 = vld [vmem:[#allocation2 + $0x8] sm:$0xff]
    %v76 = vld [vmem:[#allocation2 + $0x10] sm:$0xff]
    %v77 = vld [vmem:[#allocation2 + $0x18] sm:$0xff]
    %v78 = vld [vmem:[#allocation2 + $0x20] sm:$0xff]
    %v79 = vld [vmem:[#allocation2 + $0x28] sm:$0xff]
    %v80 = vld [vmem:[#allocation2 + $0x30] sm:$0xff]
    %v81 = vld [vmem:[#allocation2 + $0x38] sm:$0xff]
    %v82 = vld [vmem:[#allocation2 + $0x40] sm:$0xff]
    %v83 = vld [vmem:[#allocation2 + $0x48] sm:$0xff]
    %v84 = vld [vmem:[#allocation2 + $0x50] sm:$0xff]
    %v85 = vld [vmem:[#allocation2 + $0x58] sm:$0xff]
    %v86 = vld [vmem:[#allocation2 + $0x60] sm:$0xff]
    %v87 = vld [vmem:[#allocation2 + $0x68] sm:$0xff]
    %v88 = vld [vmem:[#allocation2 + $0x70] sm:$0xff]
    %v89 = vld [vmem:[#allocation2 + $0x78] sm:$0xff]
    %v90 = vld [vmem:[%s2] sm:$0x1]
    %v92 = vperm.slane %v90, 0
    %94 = vmatpush.msra.mxu0 %v89
    %95 = vmatpush.msra.mxu0 %v88
    %96 = vmatpush.msra.mxu0 %v87
    %97 = vmatpush.msra.mxu0 %v86
    %98 = vmatpush.msra.mxu0 %v85
    %99 = vmatpush.msra.mxu0 %v84
    %100 = vmatpush.msra.mxu0 %v83
    %101 = vmatpush.msra.mxu0 %v82
    %102 = vmatpush.msra.mxu0 %v81
    %103 = vmatpush.msra.mxu0 %v80
    %104 = vmatpush.msra.mxu0 %v79
    %105 = vmatpush.msra.mxu0 %v78
    %106 = vmatpush.msra.mxu0 %v77
    %107 = vmatpush.msra.mxu0 %v76
    %108 = vmatpush.msra.mxu0 %v75
    %109 = vmatpush.msra.mxu0 %v74
    %110 = vmatmul.f32.gmra.mxu0 %v73
    %v111 = vpop.f32.mrf.mxu0
    %v112 = vadd.f32 %v92, %v111
    %113 = vdwg.mxu0
    %v114 = vmax.f32 %v112, 0.0
    %v115 = vld [vmem:[#allocation4] sm:$0xff]
    %v116 = vld [vmem:[#allocation4 + $0x8] sm:$0xff]
    %v117 = vld [vmem:[#allocation4 + $0x10] sm:$0xff]
    %v118 = vld [vmem:[#allocation4 + $0x18] sm:$0xff]
    %v119 = vld [vmem:[#allocation4 + $0x20] sm:$0xff]
    %v120 = vld [vmem:[#allocation4 + $0x28] sm:$0xff]
    %v121 = vld [vmem:[#allocation4 + $0x30] sm:$0xff]
    %v122 = vld [vmem:[#allocation4 + $0x38] sm:$0xff]
    %v123 = vld [vmem:[#allocation4 + $0x40] sm:$0xff]
    %v124 = vld [vmem:[#allocation4 + $0x48] sm:$0xff]
    %v125 = vld [vmem:[#allocation4 + $0x50] sm:$0xff]
    %v126 = vld [vmem:[#allocation4 + $0x58] sm:$0xff]
    %v127 = vld [vmem:[#allocation4 + $0x60] sm:$0xff]
    %v128 = vld [vmem:[#allocation4 + $0x68] sm:$0xff]
    %v129 = vld [vmem:[#allocation4 + $0x70] sm:$0xff]
    %v130 = vld [vmem:[#allocation4 + $0x78] sm:$0xff]
    %v131 = vld [vmem:[%s4] sm:$0x1]
    %v133 = vperm.slane %v131, 0
    %135 = vmatpush.msra.mxu0 %v130
    %136 = vmatpush.msra.mxu0 %v129
    %137 = vmatpush.msra.mxu0 %v128
    %138 = vmatpush.msra.mxu0 %v127
    %139 = vmatpush.msra.mxu0 %v126
    %140 = vmatpush.msra.mxu0 %v125
    %141 = vmatpush.msra.mxu0 %v124
    %142 = vmatpush.msra.mxu0 %v123
    %143 = vmatpush.msra.mxu0 %v122
    %144 = vmatpush.msra.mxu0 %v121
    %145 = vmatpush.msra.mxu0 %v120
    %146 = vmatpush.msra.mxu0 %v119
    %147 = vmatpush.msra.mxu0 %v118
    %148 = vmatpush.msra.mxu0 %v117
    %149 = vmatpush.msra.mxu0 %v116
    %150 = vmatpush.msra.mxu0 %v115
    %151 = vmatmul.f32.gmra.mxu0 %v114
    %v152 = vpop.f32.mrf.mxu0
    %v153 = vadd.f32 %v133, %v152
    %154 = vdwg.mxu0
    %v155 = vadd.f32 %v153, %v114
    %v156 = vmax.f32 %v155, 0.0
    %v157 = vld [vmem:[#allocation6] sm:$0xff]
    %v158 = vld [vmem:[#allocation6 + $0x8] sm:$0xff]
    %v159 = vld [vmem:[#allocation6 + $0x10] sm:$0xff]
    %v160 = vld [vmem:[#allocation6 + $0x18] sm:$0xff]
    %v161 = vld [vmem:[#allocation6 + $0x20] sm:$0xff]
    %v162 = vld [vmem:[#allocation6 + $0x28] sm:$0xff]
    %v163 = vld [vmem:[#allocation6 + $0x30] sm:$0xff]
    %v164 = vld [vmem:[#allocation6 + $0x38] sm:$0xff]
    %v165 = vld [vmem:[#allocation6 + $0x40] sm:$0xff]
    %v166 = vld [vmem:[#allocation6 + $0x48] sm:$0xff]
    %v167 = vld [vmem:[#allocation6 + $0x50] sm:$0xff]
    %v168 = vld [vmem:[#allocation6 + $0x58] sm:$0xff]
    %v169 = vld [vmem:[#allocation6 + $0x60] sm:$0xff]
    %v170 = vld [vmem:[#allocation6 + $0x68] sm:$0xff]
    %v171 = vld [vmem:[#allocation6 + $0x70] sm:$0xff]
    %v172 = vld [vmem:[#allocation6 + $0x78] sm:$0xff]
    %v173 = vld [vmem:[%s6] sm:$0x1]
    %v175 = vperm.slane %v173, 0
    %177 = vmatpush.msra.mxu0 %v172
    %178 = vmatpush.msra.mxu0 %v171
    %179 = vmatpush.msra.mxu0 %v170
    %180 = vmatpush.msra.mxu0 %v169
    %181 = vmatpush.msra.mxu0 %v168
    %182 = vmatpush.msra.mxu0 %v167
    %183 = vmatpush.msra.mxu0 %v166
    %184 = vmatpush.msra.mxu0 %v165
    %185 = vmatpush.msra.mxu0 %v164
    %186 = vmatpush.msra.mxu0 %v163
    %187 = vmatpush.msra.mxu0 %v162
    %188 = vmatpush.msra.mxu0 %v161
    %189 = vmatpush.msra.mxu0 %v160
    %190 = vmatpush.msra.mxu0 %v159
    %191 = vmatpush.msra.mxu0 %v158
    %192 = vmatpush.msra.mxu0 %v157
    %193 = vmatmul.f32.gmra.mxu0 %v156
    %v194 = vpop.f32.mrf.mxu0
    %v195 = vadd.f32 %v175, %v194
    %196 = vdwg.mxu0
    %v197 = vsub.f32 0.0, %v195
    %v198 = vmul.f32 %v197, 1.442695
    %v199 = vpow.pop %v198
    %v200 = vadd.f32 %v199, 1.0
    %v201 = vrcp.pop %v200
    %202 = vst [vmem:[%s7] sm:$0xff] %v201
    // Predicated region
    $region42: #{_fused_mlp_forward.1} parent=1 // pred_check
      _
    $region43: #{_fused_mlp_forward.1} parent=1 // pred_check_branch
      %204 = sbr.rel (0) target = $region45
    $region44: #{_fused_mlp_forward.1} parent=1 // pred_region
      _
    $region45: #{_fused_mlp_forward.1} parent=1 // pred_fallthru
      _
    // Predicated region
    $region46: #{_fused_mlp_forward.1} parent=1 // pred_check
      _
    $region47: #{_fused_mlp_forward.1} parent=1 // pred_check_branch
      %206 = sbr.rel (0) target = $region49
    $region48: #{_fused_mlp_forward.1} parent=1 // pred_region
      _
    $region49: #{_fused_mlp_forward.1} parent=1 // pred_fallthru
      _
    %207 = vsyncpa [#allocation3], 1
    %208 = vsyncpa [#allocation5], 1

</llo_original>
